<compile_context>
chip_gen: v7x
topology: tpu7x:2x2x1
jax: 0.10.0
libtpu: 0.0.40
codegen_flags: <defaults>
</compile_context>

<pallas_src>
import functools
import math

import jax
import jax.numpy as jnp
import numpy as np
from jax.experimental import pallas as pl
from jax.experimental.pallas import tpu as pltpu


# ============================================================================
# Pallas kernels
# ============================================================================
def _matmul_bias_kernel(x_ref, wt_ref, b_ref, o_ref, acc_ref):
    """Hot-path kernel: y = x @ W_eff^T + b with W_eff pre-masked in wrapper.

    x_ref:   (tile_b, tile_k)   input tile            [batch, in]
    wt_ref:  (tile_k, tile_n)   pre-masked, pre-transposed weight tile [in, out]
    b_ref:   (1, tile_n)        bias tile (f32)
    o_ref:   (tile_b, tile_n)   output tile
    acc_ref: (tile_b, tile_n)   f32 accumulator (VMEM scratch)
    """
    k = pl.program_id(2)

    @pl.when(k == 0)
    def _():
        acc_ref[...] = jnp.zeros_like(acc_ref)

    acc_ref[...] += jnp.dot(x_ref[...], wt_ref[...],
                            preferred_element_type=jnp.float32)

    @pl.when(k == pl.num_programs(2) - 1)
    def _():
        o_ref[...] = (acc_ref[...] + b_ref[...].astype(jnp.float32)
                      ).astype(o_ref.dtype)


def _fused_mask_matmul_kernel(x_ref, wt_ref, b_ref, o_ref, acc_ref, *,
                              mode, e_size, group_size, block_groups,
                              tile_n, tile_k):
    """One-shot kernel: Dale/block mask generated in-kernel from rank-1 iotas
    (no 2-D int32 iota tiles; ~2 full-tile VPU passes in 'dense' mode)."""
    j = pl.program_id(1)   # output (N) tile index
    k = pl.program_id(2)   # reduction (K / input) tile index

    @pl.when(k == 0)
    def _():
        acc_ref[...] = jnp.zeros_like(acc_ref)

    w = wt_ref[...]                      # (tile_k, tile_n), (in, out) layout
    if mode != "none":
        # Rank-1 global index vectors: in_idx varies over sublanes (K),
        # out_idx over lanes (N).
        in_idx = k * tile_k + jax.lax.broadcasted_iota(
            jnp.int32, (tile_k, 1), 0)                 # global input index (W col)
        out_idx = j * tile_n + jax.lax.broadcasted_iota(
            jnp.int32, (1, tile_n), 1)                 # global output index (W row)

        sign = jnp.where(in_idx < e_size, 1.0, -1.0).astype(w.dtype)  # (tile_k,1)
        w = jnp.abs(w) * sign                          # broadcast over lanes

        if mode == "block" and block_groups > 1 and group_size > 0:
            in_grp = jnp.zeros((tile_k, 1), jnp.int32)
            out_grp = jnp.zeros((1, tile_n), jnp.int32)
            for g in range(1, block_groups):
                boundary = g * group_size
                in_grp = in_grp + (in_idx >= boundary).astype(jnp.int32)
                out_grp = out_grp + (out_idx >= boundary).astype(jnp.int32)
            blocked = ((in_idx < e_size) & (out_idx < e_size)
                       & (in_grp != out_grp))          # single 2-D compare/combine
            w = jnp.where(blocked, jnp.zeros([], w.dtype), w)

        # tile_n == tile_k, so only diagonal (j == k) tiles can contain
        # in_idx == out_idx: gate the 2-D compare+select on j == k.
        w = jax.lax.cond(
            j == k,
            lambda wv: jnp.where(in_idx == out_idx, jnp.zeros([], wv.dtype), wv),
            lambda wv: wv,
            w)

    acc_ref[...] += jnp.dot(x_ref[...], w, preferred_element_type=jnp.float32)

    @pl.when(k == pl.num_programs(2) - 1)
    def _():
        o_ref[...] = (acc_ref[...] + b_ref[...].astype(jnp.float32)
                      ).astype(o_ref.dtype)


# ============================================================================
# Wrapper helpers
# ============================================================================
def _round_up(x, m):
    return ((x + m - 1) // m) * m


def _pick_tile(dim_pad, candidates=(512, 256, 128)):
    # dim_pad is a multiple of 128, so this always returns a 128-granular tile.
    for c in candidates:
        if dim_pad % c == 0:
            return c
    return dim_pad


def _effective_weight(weight, *, e_size, mode, block_groups):
    """XLA-side W_eff = |W| * dale * block, PyTorch (out, in) layout."""
    H = weight.shape[0]
    if mode == "none":
        return weight                                   # raw weight, no diag zero
    row = jnp.arange(H)                                 # output index (W row)
    col = jnp.arange(H)                                 # input index  (W col)
    sign = jnp.where(col < e_size, 1.0, -1.0).astype(weight.dtype)
    w = jnp.abs(weight) * sign[None, :]
    w = jnp.where(row[:, None] == col[None, :], jnp.zeros([], w.dtype), w)
    if mode == "block" and block_groups > 1:
        group_size = e_size // block_groups
        if group_size > 0:
            grp = jnp.minimum(jnp.arange(H) // group_size, block_groups - 1)
            blocked = ((row[:, None] < e_size) & (col[None, :] < e_size)
                       & (grp[:, None] != grp[None, :]))
            w = jnp.where(blocked, jnp.zeros([], w.dtype), w)
    return w


def _pallas_matmul_call(x_p, wt_p, b_p, out_dtype, kernel_factory):
    """Shared pallas_call: y_pad = x_p @ wt_p + b_p (all inputs pre-padded)."""
    b_pad, h_pad = x_p.shape
    tile_n = _pick_tile(h_pad)
    tile_k = tile_n                      # square weight; fused path relies on ==
    tile_b = min(b_pad, 512)             # single batch tile for typical RNN batches
    grid = (b_pad // tile_b, h_pad // tile_n, h_pad // tile_k)

    kernel = kernel_factory(tile_n, tile_k)

    flops = 2 * b_pad * h_pad * h_pad
    bytes_accessed = (x_p.size * x_p.dtype.itemsize
                      + wt_p.size * wt_p.dtype.itemsize * (b_pad // tile_b)
                      + b_p.size * 4
                      + b_pad * h_pad * jnp.dtype(out_dtype).itemsize)

    return pl.pallas_call(
        kernel,
        out_shape=jax.ShapeDtypeStruct((b_pad, h_pad), out_dtype),
        grid_spec=pltpu.PrefetchScalarGridSpec(
            num_scalar_prefetch=0,
            grid=grid,
            in_specs=[
                pl.BlockSpec((tile_b, tile_k), lambda i, j, k: (i, k)),   # x
                # Optional lever if DMA is exposed at large H / small B:
                # pipeline_mode=pl.Buffered(3) on this weight spec.
                pl.BlockSpec((tile_k, tile_n), lambda i, j, k: (k, j)),   # W_eff^T
                pl.BlockSpec((1, tile_n), lambda i, j, k: (0, j)),        # bias
            ],
            out_specs=pl.BlockSpec((tile_b, tile_n), lambda i, j, k: (i, j)),
            scratch_shapes=[pltpu.VMEM((tile_b, tile_n), jnp.float32)],
        ),
        compiler_params=pltpu.CompilerParams(
            dimension_semantics=("parallel", "parallel", "arbitrary"),
            vmem_limit_bytes=32 * 1024 * 1024),
        cost_estimate=pl.CostEstimate(
            flops=int(flops), transcendentals=0,
            bytes_accessed=int(bytes_accessed)),
    )(x_p, wt_p, b_p)


# ============================================================================
# Public API
# ============================================================================
def prepare_ei_rec_weights(weight, bias, *, e_size, mode="none",
                           block_groups=2, compute_dtype=None):
    """One-time layout pass: apply Dale/block masks, transpose to (in, out),
    pad to lane-dense multiples of 128, optionally cast (masks applied in f32
    BEFORE the cast). Hoist this out of any recurrent scan and reuse the
    returned (wt_p, b_p) for every timestep."""
    H = weight.shape[0]
    w_eff = _effective_weight(weight, e_size=e_size, mode=mode,
                              block_groups=block_groups)
    h_pad = _round_up(max(H, 128), 128)
    wdt = compute_dtype if compute_dtype is not None else weight.dtype
    wt_p = jnp.zeros((h_pad, h_pad), wdt).at[:H, :H].set(w_eff.T.astype(wdt))
    b = (jnp.zeros((H,), jnp.float32) if bias is None
         else bias.astype(jnp.float32))
    b_p = jnp.zeros((1, h_pad), jnp.float32).at[0, :H].set(b)
    return wt_p, b_p


def ei_rec_matmul(x, wt_p, b_p, *, compute_dtype=None):
    """Per-timestep call: y = x @ wt_p + b using prepared padded weights."""
    B, H = x.shape
    h_pad = wt_p.shape[0]
    xdt = compute_dtype if compute_dtype is not None else x.dtype
    b_base = _round_up(max(B, 8), 8)
    tile_b = min(b_base, 512)
    b_pad = _round_up(b_base, tile_b)
    x_p = jnp.zeros((b_pad, h_pad), xdt).at[:B, :H].set(x.astype(xdt))
    y_pad = _pallas_matmul_call(x_p, wt_p, b_p, x.dtype,
                                lambda tn, tk: _matmul_bias_kernel)
    return y_pad[:B, :H]


def ei_rec_linear(x, weight, bias, *, e_size, mode="none", block_groups=2,
                  compute_dtype=None, fuse_mask=False):
    """Pallas implementation of EIRecLinear.forward.

    x:      (B, H)      input
    weight: (H, H)      raw weight, PyTorch (out, in) layout
    bias:   (H,) or None
    fuse_mask=False (default): masks hoisted to a one-time XLA pass (hot path).
    fuse_mask=True: masks generated in-kernel (one-shot / no-precompute path).
    """
    B, H = x.shape
    assert weight.shape == (H, H)

    if not fuse_mask:
        wt_p, b_p = prepare_ei_rec_weights(
            weight, bias, e_size=e_size, mode=mode, block_groups=block_groups,
            compute_dtype=compute_dtype)
        return ei_rec_matmul(x, wt_p, b_p, compute_dtype=compute_dtype)

    # ---- fused one-shot path: raw weight in, mask built in-kernel ----------
    h_pad = _round_up(max(H, 128), 128)
    wdt = compute_dtype if compute_dtype is not None else weight.dtype
    wt_p = jnp.zeros((h_pad, h_pad), wdt).at[:H, :H].set(weight.T.astype(wdt))
    b = (jnp.zeros((H,), jnp.float32) if bias is None
         else bias.astype(jnp.float32))
    b_p = jnp.zeros((1, h_pad), jnp.float32).at[0, :H].set(b)

    xdt = compute_dtype if compute_dtype is not None else x.dtype
    b_base = _round_up(max(B, 8), 8)
    tile_b = min(b_base, 512)
    b_pad = _round_up(b_base, tile_b)
    x_p = jnp.zeros((b_pad, h_pad), xdt).at[:B, :H].set(x.astype(xdt))

    group_size = (e_size // block_groups) if (mode == "block" and block_groups > 0) else 0

    def kernel_factory(tn, tk):
        return functools.partial(
            _fused_mask_matmul_kernel, mode=mode, e_size=e_size,
            group_size=group_size, block_groups=block_groups,
            tile_n=tn, tile_k=tk)

    y_pad = _pallas_matmul_call(x_p, wt_p, b_p, x.dtype, kernel_factory)
    return y_pad[:B, :H]


# ============================================================================
# Deterministic parameter / mask construction (mirrors __init__ shapes; exact
# PyTorch RNG streams are not reproduced).  Masks are only used by the pure-JAX
# reference — the kernel paths never read them from HBM.
# ============================================================================
def make_params_and_masks(key, hidden_size, e_prop, mode="dense",
                          block_groups=2):
    e_size = int(e_prop * hidden_size)
    i_size = hidden_size - e_size

    kw, kb = jax.random.split(key)
    fan_in = hidden_size
    bound = 1.0 / math.sqrt(fan_in)          # kaiming_uniform_(a=sqrt(5))
    weight = jax.random.uniform(kw, (hidden_size, hidden_size),
                                minval=-bound, maxval=bound,
                                dtype=jnp.float32)
    if mode in ("dense", "block"):
        weight = weight.at[:, :e_size].divide(e_size / i_size)

    bias = jax.random.uniform(kb, (hidden_size,),
                              minval=-bound, maxval=bound, dtype=jnp.float32)

    # Dale mask (reference only)
    if mode in ("dense", "block"):
        dale = np.tile([1.0] * e_size + [-1.0] * i_size, (hidden_size, 1))
    else:
        dale = np.ones((hidden_size, hidden_size))
    np.fill_diagonal(dale, 0.0)
    dale_mask = jnp.asarray(dale, dtype=jnp.float32)

    # Block mask (reference only)
    if mode == "block":
        group_size = e_size // block_groups
        bm = np.ones((hidden_size, hidden_size), dtype=np.float32)
        for g in range(block_groups):
            start = g * group_size
            end = (g + 1) * group_size if g < block_groups - 1 else e_size
            bm[start:end, :start] = 0.0
            bm[start:end, end:e_size] = 0.0
        bm[:, e_size:] = 1.0
        bm[e_size:, :] = 1.0
    else:
        bm = np.ones((hidden_size, hidden_size), dtype=np.float32)
    block_mask = jnp.asarray(bm, dtype=jnp.float32)

    return weight, bias, dale_mask, block_mask, e_size


def reference_forward(x, weight, dale_mask, block_mask, bias, mode):
    if mode == "none":
        w_eff = weight
    else:
        w_eff = jnp.abs(weight) * dale_mask * block_mask
    return x @ w_eff.T + bias[None, :]


# ============================================================================
if __name__ == "__main__":
    hidden_size = 32
    e_prop = 0.8
    batch = 8
    block_groups = 2

    key = jax.random.PRNGKey(0)
    kx, kp = jax.random.split(key)
    x = jax.random.normal(kx, (batch, hidden_size), dtype=jnp.float32)

    for mode in ("none", "dense", "block"):
        weight, bias, dale_mask, block_mask, e_size = make_params_and_masks(
            kp, hidden_size, e_prop, mode=mode, block_groups=block_groups)
        y_ref = reference_forward(x, weight, dale_mask, block_mask, bias, mode)

        # Hot path: masks hoisted to a one-time wrapper pass, kernel is a pure
        # pipelined MXU matmul (what a recurrent scan should call per step).
        y = jax.block_until_ready(
            ei_rec_linear(x, weight, bias, e_size=e_size, mode=mode,
                          block_groups=block_groups, fuse_mask=False))
        np.testing.assert_allclose(np.asarray(y), np.asarray(y_ref),
                                   rtol=1e-5, atol=1e-5)

        # One-shot path: rank-1 factorized in-kernel masks.
        y_fused = jax.block_until_ready(
            ei_rec_linear(x, weight, bias, e_size=e_size, mode=mode,
                          block_groups=block_groups, fuse_mask=True))
        np.testing.assert_allclose(np.asarray(y_fused), np.asarray(y_ref),
                                   rtol=1e-5, atol=1e-5)

    # bf16 operands (wrapper-side cast, masks applied in f32 before the cast,
    # f32 MXU accumulation) — loose tolerance.
    weight, bias, dale_mask, block_mask, e_size = make_params_and_masks(
        kp, hidden_size, e_prop, mode="dense", block_groups=block_groups)
    y_ref = reference_forward(x, weight, dale_mask, block_mask, bias, "dense")
    y_bf16 = jax.block_until_ready(
        ei_rec_linear(x, weight, bias, e_size=e_size, mode="dense",
                      block_groups=block_groups, compute_dtype=jnp.bfloat16))
    np.testing.assert_allclose(np.asarray(y_bf16), np.asarray(y_ref),
                               rtol=5e-2, atol=5e-2)

    print("KERNEL_OK")
</pallas_src>

<mosaic_0001>
module attributes {stable_mosaic.version = 11 : i64} {
  func.func @_matmul_bias_kernel(%arg0: i32, %arg1: i32, %arg2: i32, %arg3: memref<8x128xf32, #tpu.memory_space<vmem>>, %arg4: memref<128x128xf32, #tpu.memory_space<vmem>>, %arg5: memref<1x128xf32, #tpu.memory_space<vmem>>, %arg6: memref<8x128xf32, #tpu.memory_space<vmem>>, %arg7: memref<8x128xf32, #tpu.memory_space<vmem>>) attributes {dimension_semantics = [#tpu.dimension_semantics<parallel>, #tpu.dimension_semantics<parallel>, #tpu.dimension_semantics<arbitrary>], iteration_bounds = array<i64: 1, 1, 1>, scalar_prefetch = 0 : i64, scratch_operands = 1 : i64, tpu.core_type = #tpu.core_type<tc>, window_params = [{transform_indices = @transform_0, window_bounds = array<i64: 8, 128>}, {transform_indices = @transform_1, window_bounds = array<i64: 128, 128>}, {transform_indices = @transform_2, window_bounds = array<i64: 1, 128>}, {transform_indices = @transform_3, window_bounds = array<i64: 8, 128>}]} {
    %c0_i32 = arith.constant 0 : i32
    %0 = arith.cmpi eq, %arg2, %c0_i32 : i32
    %1 = arith.extui %0 : i1 to i32
    %c0_i32_0 = arith.constant 0 : i32
    %2 = arith.cmpi ne, %1, %c0_i32_0 : i32
    scf.if %2 {
      %cst_10 = arith.constant 0.000000e+00 : f32
      %12 = vector.broadcast %cst_10 : f32 to vector<8x128xf32>
      %c0_11 = arith.constant 0 : index
      %c0_12 = arith.constant 0 : index
      %13 = vector.load %arg7[%c0_11, %c0_12] : memref<8x128xf32, #tpu.memory_space<vmem>>, vector<8x128xf32>
      tpu.vector_store %arg7[%c0_11, %c0_12], %12 {strides = array<i32>} : memref<8x128xf32, #tpu.memory_space<vmem>>, vector<8x128xf32>,
    } else {
    }
    %c0 = arith.constant 0 : index
    %c0_1 = arith.constant 0 : index
    %3 = vector.load %arg7[%c0, %c0_1] : memref<8x128xf32, #tpu.memory_space<vmem>>, vector<8x128xf32>
    %c0_2 = arith.constant 0 : index
    %c0_3 = arith.constant 0 : index
    %4 = vector.load %arg3[%c0_2, %c0_3] : memref<8x128xf32, #tpu.memory_space<vmem>>, vector<8x128xf32>
    %c0_4 = arith.constant 0 : index
    %c0_5 = arith.constant 0 : index
    %5 = vector.load %arg4[%c0_4, %c0_5] : memref<128x128xf32, #tpu.memory_space<vmem>>, vector<128x128xf32>
    %cst = arith.constant dense<0.000000e+00> : vector<8x128xf32>
    %6 = tpu.matmul %4, %5, %cst {dimension_numbers = #tpu.dot_dimension_numbers<[1], [0], [0], [1], [0, 0, 1, 1], [], []>} : vector<8x128xf32>, vector<128x128xf32>, vector<8x128xf32> -> vector<8x128xf32>
    %7 = arith.addf %3, %6 : vector<8x128xf32>
    %c0_6 = arith.constant 0 : index
    %c0_7 = arith.constant 0 : index
    %8 = vector.load %arg7[%c0_6, %c0_7] : memref<8x128xf32, #tpu.memory_space<vmem>>, vector<8x128xf32>
    tpu.vector_store %arg7[%c0_6, %c0_7], %7 {strides = array<i32>} : memref<8x128xf32, #tpu.memory_space<vmem>>, vector<8x128xf32>,
    %c0_i32_8 = arith.constant 0 : i32
    %9 = arith.cmpi eq, %arg2, %c0_i32_8 : i32
    %10 = arith.extui %9 : i1 to i32
    %c0_i32_9 = arith.constant 0 : i32
    %11 = arith.cmpi ne, %10, %c0_i32_9 : i32
    scf.if %11 {
      %c0_10 = arith.constant 0 : index
      %c0_11 = arith.constant 0 : index
      %12 = vector.load %arg7[%c0_10, %c0_11] : memref<8x128xf32, #tpu.memory_space<vmem>>, vector<8x128xf32>
      %c0_12 = arith.constant 0 : index
      %c0_13 = arith.constant 0 : index
      %13 = vector.load %arg5[%c0_12, %c0_13] : memref<1x128xf32, #tpu.memory_space<vmem>>, vector<1x128xf32>
      %14 = vector.broadcast %13 : vector<1x128xf32> to vector<8x128xf32>
      %15 = arith.addf %12, %14 : vector<8x128xf32>
      %c0_14 = arith.constant 0 : index
      %c0_15 = arith.constant 0 : index
      %16 = vector.load %arg6[%c0_14, %c0_15] : memref<8x128xf32, #tpu.memory_space<vmem>>, vector<8x128xf32>
      tpu.vector_store %arg6[%c0_14, %c0_15], %15 {strides = array<i32>} : memref<8x128xf32, #tpu.memory_space<vmem>>, vector<8x128xf32>,
    } else {
    }
    return
  }
  func.func @transform_0(%arg0: i32, %arg1: i32, %arg2: i32) -> (i32, i32) {
    %c0_i32 = arith.constant 0 : i32
    return %arg0, %arg2 : i32, i32
  }
  func.func @transform_1(%arg0: i32, %arg1: i32, %arg2: i32) -> (i32, i32) {
    %c0_i32 = arith.constant 0 : i32
    return %arg2, %arg1 : i32, i32
  }
  func.func @transform_2(%arg0: i32, %arg1: i32, %arg2: i32) -> (i32, i32) {
    %c0_i32 = arith.constant 0 : i32
    %c0_i32_0 = arith.constant 0 : i32
    return %c0_i32, %arg1 : i32, i32
  }
  func.func @transform_3(%arg0: i32, %arg1: i32, %arg2: i32) -> (i32, i32) {
    %c0_i32 = arith.constant 0 : i32
    return %arg0, %arg1 : i32, i32
  }
}

</mosaic_0001>

<llo_original>
// kernel: tpu_custom_call.1
$region0: #{tpu_custom_call.1}
  #allocation0 [shape = 'u32[]', space=smem, size = 0x4, offset = 0x4, fixed_abs, tag = 'smem constant byte address 0x4 - core index']
  #allocation1 [shape = 'u32[144,128]{1,0:T(1,128)}', space=vmem, size = 0x12000, scoped, tag = 'internal scratch']
  #allocation2 [shape = 'f32[8,128]{1,0:T(8,128)}', space=vmem, size = 0x1000, scoped, tag = 'scratch operand']
  %s0 = inlined_call_operand.hbm [shape: f32[8,128], index: 0, kind: input, shape index: {}]
  %s1 = inlined_call_operand.hbm [shape: f32[128,128], index: 1, kind: input, shape index: {}]
  %s2 = inlined_call_operand.vmem [shape: f32[1,128], index: 2, kind: input, shape index: {}]
  %s3 = inlined_call_operand.hbm [shape: f32[8,128], index: 3, kind: output, shape index: {}]
  %s4 = sld [smem:[#allocation0]]
  $region38: #{tpu_custom_call.1} parent=0
    _
  %s6 = ssub.s32 1, %s4
  %s7 = scalar_select 0, %s6, %s4
  $region1: #{tpu_custom_call.1} parent=0
    #allocation3 [shape = 'u8[4096]{0}', space=vmem, size = 0x1000, scoped, tag = 'input window, operand 0, single buffered']
    #allocation4 [shape = 's32[1]{0}', space=sflag, size = 0x4, scoped, tag = 'scoped memory for tpu_custom_call.1']
    #allocation5 [shape = 's32[1]{0}', space=sflag, size = 0x4, scoped, tag = 'scoped memory for tpu_custom_call.1']
    #allocation6 [shape = 'u8[65536]{0}', space=vmem, size = 0x10000, scoped, tag = 'input window, operand 1, single buffered']
    #allocation7 [shape = 's32[1]{0}', space=sflag, size = 0x4, scoped, tag = 'scoped memory for tpu_custom_call.1']
    #allocation8 [shape = 'u8[4096]{0}', space=vmem, size = 0x1000, scoped, tag = 'output window, operand 0, single buffered']
    %8 = vsyncpa [#allocation4], 0
    %9 = vsyncpa [#allocation7], 0
    %10 = vsyncpa [#allocation5], 0
    // Predicated region
    $region2: #{tpu_custom_call.1} parent=1 // pred_check
      _
    $region3: #{tpu_custom_call.1} parent=1 // pred_check_branch
      %12 = sbr.rel (0) target = $region5
    $region4: #{tpu_custom_call.1} parent=1 // pred_region
      %s14 = ssub.s32 128, 128
      %15 = vsyncadd [#allocation4], %s14
      %s17 = sshll.u32 [#allocation3], 4
      %s18 = int_to_ptr.vmem [resolvable:$true] %s17
      %20 = dma.hbm_to_vmem [thread:$0]  %s0, 128, %s18, [#allocation4]
    $region5: #{tpu_custom_call.1} parent=1 // pred_fallthru
      _
    // Predicated region
    $region6: #{tpu_custom_call.1} parent=1 // pred_check
      _
    $region7: #{tpu_custom_call.1} parent=1 // pred_check_branch
      %22 = sbr.rel (0) target = $region9
    $region8: #{tpu_custom_call.1} parent=1 // pred_region
      %s24 = ssub.s32 2048, 2048
      %25 = vsyncadd [#allocation7], %s24
      %s26 = sshll.u32 [#allocation6], 4
      %s27 = int_to_ptr.vmem [resolvable:$true] %s26
      %32 = dma.hbm_to_vmem [thread:$0]  %s1, 2048, %s27, [#allocation7], 128, 128, 8
    $region9: #{tpu_custom_call.1} parent=1 // pred_fallthru
      _
    // Predicated region
    $region10: #{tpu_custom_call.1} parent=1 // pred_check
      _
    $region11: #{tpu_custom_call.1} parent=1 // pred_check_branch
      %34 = sbr.rel (0) target = $region13
    $region12: #{tpu_custom_call.1} parent=1 // pred_region
      _
    $region13: #{tpu_custom_call.1} parent=1 // pred_fallthru
      _
    // Predicated region
    $region14: #{tpu_custom_call.1} parent=1 // pred_check
      _
    $region15: #{tpu_custom_call.1} parent=1 // pred_check_branch
      %36 = sbr.rel (0) target = $region17
    $region16: #{tpu_custom_call.1} parent=1 // pred_region
      %37 = dma.done [#allocation4], 128
    $region17: #{tpu_custom_call.1} parent=1 // pred_fallthru
      _
    // Predicated region
    $region18: #{tpu_custom_call.1} parent=1 // pred_check
      _
    $region19: #{tpu_custom_call.1} parent=1 // pred_check_branch
      %39 = sbr.rel (0) target = $region21
    $region20: #{tpu_custom_call.1} parent=1 // pred_region
      %40 = dma.done [#allocation7], 2048
    $region21: #{tpu_custom_call.1} parent=1 // pred_fallthru
      _
    %p41 = scmp.eq.s32.totalorder 0, 0
    // Predicated region
    $region22: #{tpu_custom_call.1} parent=1 // pred_check
      %p42 = pneg %p41
    $region23: #{tpu_custom_call.1} parent=1 // pred_check_branch
      %44 = sbr.rel (%p42) target = $region25
    $region24: #{tpu_custom_call.1} parent=1 // pred_region
      %45 = vst [vmem:[#allocation2] sm:$0xff] 0.0
    $region25: #{tpu_custom_call.1} parent=1 // pred_fallthru
      _
    %v46 = vld [vmem:[#allocation2] sm:$0xff]
    %v47 = vld [vmem:[#allocation3] sm:$0xff]
    %v48 = vld [vmem:[#allocation6] sm:$0xff]
    %v49 = vld [vmem:[#allocation6 + $0x8] sm:$0xff]
    %v50 = vld [vmem:[#allocation6 + $0x10] sm:$0xff]
    %v51 = vld [vmem:[#allocation6 + $0x18] sm:$0xff]
    %v52 = vld [vmem:[#allocation6 + $0x20] sm:$0xff]
    %v53 = vld [vmem:[#allocation6 + $0x28] sm:$0xff]
    %v54 = vld [vmem:[#allocation6 + $0x30] sm:$0xff]
    %v55 = vld [vmem:[#allocation6 + $0x38] sm:$0xff]
    %v56 = vld [vmem:[#allocation6 + $0x40] sm:$0xff]
    %v57 = vld [vmem:[#allocation6 + $0x48] sm:$0xff]
    %v58 = vld [vmem:[#allocation6 + $0x50] sm:$0xff]
    %v59 = vld [vmem:[#allocation6 + $0x58] sm:$0xff]
    %v60 = vld [vmem:[#allocation6 + $0x60] sm:$0xff]
    %v61 = vld [vmem:[#allocation6 + $0x68] sm:$0xff]
    %v62 = vld [vmem:[#allocation6 + $0x70] sm:$0xff]
    %v63 = vld [vmem:[#allocation6 + $0x78] sm:$0xff]
    %64 = vmatprep.subr.mxu0 0.0
    %65 = vmatpush1.msra.mxu0 %v48
    %66 = vmatprep.subr.mxu0 0.0
    %67 = vmatpush1.msra.mxu0 %v49
    %68 = vmatprep.subr.mxu0 0.0
    %69 = vmatpush1.msra.mxu0 %v50
    %70 = vmatprep.subr.mxu0 0.0
    %71 = vmatpush1.msra.mxu0 %v51
    %72 = vmatprep.subr.mxu0 0.0
    %73 = vmatpush1.msra.mxu0 %v52
    %74 = vmatprep.subr.mxu0 0.0
    %75 = vmatpush1.msra.mxu0 %v53
    %76 = vmatprep.subr.mxu0 0.0
    %77 = vmatpush1.msra.mxu0 %v54
    %78 = vmatprep.subr.mxu0 0.0
    %79 = vmatpush1.msra.mxu0 %v55
    %80 = vmatprep.subr.mxu0 0.0
    %81 = vmatpush1.msra.mxu0 %v56
    %82 = vmatprep.subr.mxu0 0.0
    %83 = vmatpush1.msra.mxu0 %v57
    %84 = vmatprep.subr.mxu0 0.0
    %85 = vmatpush1.msra.mxu0 %v58
    %86 = vmatprep.subr.mxu0 0.0
    %87 = vmatpush1.msra.mxu0 %v59
    %88 = vmatprep.subr.mxu0 0.0
    %89 = vmatpush1.msra.mxu0 %v60
    %90 = vmatprep.subr.mxu0 0.0
    %91 = vmatpush1.msra.mxu0 %v61
    %92 = vmatprep.subr.mxu0 0.0
    %93 = vmatpush1.msra.mxu0 %v62
    %94 = vmatprep.subr.mxu0 0.0
    %95 = vmatpush1.msra.mxu0 %v63
    %96 = vmatprep.subr.mxu0 0.0
    %97 = vmatpush1.msra.mxu0 0.0
    %98 = vmatprep.subr.mxu0 0.0
    %99 = vmatpush1.msra.mxu0 0.0
    %100 = vmatprep.subr.mxu0 0.0
    %101 = vmatpush1.msra.mxu0 0.0
    %102 = vmatprep.subr.mxu0 0.0
    %103 = vmatpush1.msra.mxu0 0.0
    %104 = vmatprep.subr.mxu0 0.0
    %105 = vmatpush1.msra.mxu0 0.0
    %106 = vmatprep.subr.mxu0 0.0
    %107 = vmatpush1.msra.mxu0 0.0
    %108 = vmatprep.subr.mxu0 0.0
    %109 = vmatpush1.msra.mxu0 0.0
    %110 = vmatprep.subr.mxu0 0.0
    %111 = vmatpush1.msra.mxu0 0.0
    %112 = vmatprep.subr.mxu0 0.0
    %113 = vmatpush1.msra.mxu0 0.0
    %114 = vmatprep.subr.mxu0 0.0
    %115 = vmatpush1.msra.mxu0 0.0
    %116 = vmatprep.subr.mxu0 0.0
    %117 = vmatpush1.msra.mxu0 0.0
    %118 = vmatprep.subr.mxu0 0.0
    %119 = vmatpush1.msra.mxu0 0.0
    %120 = vmatprep.subr.mxu0 0.0
    %121 = vmatpush1.msra.mxu0 0.0
    %122 = vmatprep.subr.mxu0 0.0
    %123 = vmatpush1.msra.mxu0 0.0
    %124 = vmatprep.subr.mxu0 0.0
    %125 = vmatpush1.msra.mxu0 0.0
    %126 = vmatprep.subr.mxu0 0.0
    %127 = vmatpush1.msra.mxu0 0.0
    %128 = vmatprep.mubr.f32.mxu0 0.0
    %129 = vmatmul.mubr.f32.gmra.mrb[0].mxu0 %v47
    %v130 = vpop.f32.mrb[0].mxu0
    %v131 = vadd.f32 0.0, %v130
    %v132 = vpop.f32.mrb[0].mxu0
    %133 = vdwg.mxu0
    %v134 = vadd.f32 %v46, %v131
    %135 = vst [vmem:[#allocation2] sm:$0xff] %v134
    // Predicated region
    $region26: #{tpu_custom_call.1} parent=1 // pred_check
      %p136 = pneg %p41
    $region27: #{tpu_custom_call.1} parent=1 // pred_check_branch
      %138 = sbr.rel (%p136) target = $region29
    $region28: #{tpu_custom_call.1} parent=1 // pred_region
      %v139 = vld [vmem:[#allocation2] sm:$0xff]
      %v140 = vld [vmem:[%s2] sm:$0x1]
      %v142 = vlaneseq
      %v143 = vshrl.u32 %v142, 7
      %v144 = vsub.s32 0, %v143
      %v145 = vrot.slane %v140, %v144
      %v147 = vadd.f32 %v139, %v145
      %148 = vst [vmem:[#allocation8] sm:$0xff] %v147
    $region29: #{tpu_custom_call.1} parent=1 // pred_fallthru
      _
    // Predicated region
    $region30: #{tpu_custom_call.1} parent=1 // pred_check
      _
    $region31: #{tpu_custom_call.1} parent=1 // pred_check_branch
      %150 = sbr.rel (0) target = $region33
    $region32: #{tpu_custom_call.1} parent=1 // pred_region
      %s152 = ssub.s32 128, 128
      %153 = vsyncadd [#allocation5], %s152
      %s155 = sshll.u32 [#allocation8], 4
      %s156 = int_to_ptr.vmem [resolvable:$true] %s155
      %158 = dma.vmem_to_hbm [thread:$0]  %s156, 128, %s3, [#allocation5]
    $region33: #{tpu_custom_call.1} parent=1 // pred_fallthru
      _
    // Predicated region
    $region34: #{tpu_custom_call.1} parent=1 // pred_check
      _
    $region35: #{tpu_custom_call.1} parent=1 // pred_check_branch
      %160 = sbr.rel (0) target = $region37
    $region36: #{tpu_custom_call.1} parent=1 // pred_region
      %161 = dma.done [#allocation5], 128
    $region37: #{tpu_custom_call.1} parent=1 // pred_fallthru
      _
    %162 = vsyncpa [#allocation4], 1
    %163 = vsyncpa [#allocation7], 1
    %164 = vsyncpa [#allocation5], 1

</llo_original>
